<compile_context>
chip_gen: v7x
topology: tpu7x:2x2x1
jax: 0.10.0
libtpu: 0.0.40
codegen_flags: <defaults>
</compile_context>

<pallas_src>
import functools

import jax
import jax.numpy as jnp
from jax.experimental import pallas as pl
from jax.experimental.pallas import tpu as pltpu


def _round_up(x, m):
    return ((x + m - 1) // m) * m


# ----------------------------------------------------------------------------
# kernel
# ----------------------------------------------------------------------------
def _mlp_kernel(num_layers, compute_dtype, act_dtype, x_ref, *refs):
    """refs = (w0, b0, ..., w_{L-1}, b_{L-1}, out_ref).

    Matmuls run in `compute_dtype` on the MXU with f32 accumulation; bias add
    is f32 (VPU); tanh runs in `act_dtype` (f32 default; bf16 on v6e/v7x to
    halve EUP pushes / vreg pressure).  The final activation is sliced to the
    true feature width before the store so the HBM output is written once at
    its real width (no wide store + wrapper slice pass).
    """
    out_ref = refs[-1]
    param_refs = refs[:-1]

    h = x_ref[...]
    for layer in range(num_layers):
        w = param_refs[2 * layer][...]                       # compute_dtype
        b = param_refs[2 * layer + 1][...].astype(jnp.float32)
        h = jnp.dot(h.astype(compute_dtype), w,
                    preferred_element_type=jnp.float32)
        h = h + b                                            # (1, out) broadcast
        if layer < num_layers - 1:                           # Tanh on all but last
            h = jnp.tanh(h.astype(act_dtype))
    out_w = out_ref.shape[1]
    out_ref[...] = h[:, :out_w].astype(out_ref.dtype)


# ----------------------------------------------------------------------------
# host-side parameter preparation (done once, not per call)
# ----------------------------------------------------------------------------
def pad_and_cast_params(weights, biases, *, compute_dtype=jnp.bfloat16, lane=128):
    """Zero-pad every weight in/out dim up to a multiple of `lane` and cast.

    Padded rows/cols and bias entries are zero, so the math is unchanged.
    Returns (padded_weights, padded_biases, true_dims) with true_dims a list
    of (in_dim, out_dim) per layer (kernel output width + honest cost model).
    Biases stay f32 (added after the f32 accumulation).
    """
    pw, pb, dims = [], [], []
    for w, b in zip(weights, biases):
        in_d, out_d = w.shape
        in_p, out_p = _round_up(in_d, lane), _round_up(out_d, lane)
        wp = jnp.zeros((in_p, out_p), compute_dtype).at[:in_d, :out_d].set(
            w.astype(compute_dtype))
        bp = jnp.zeros((1, out_p), jnp.float32).at[:, :out_d].set(
            jnp.reshape(b, (1, -1)).astype(jnp.float32))
        pw.append(wp)
        pb.append(bp)
        dims.append((in_d, out_d))
    return pw, pb, dims


# ----------------------------------------------------------------------------
# wrapper
# ----------------------------------------------------------------------------
def predict_model_forward(encoding, padded_weights, padded_biases, layer_dims, *,
                          batch_tile=512, bf16_activations=False,
                          single_buffer_params=False):
    """Run the fused MLP kernel.

    encoding:        (B, feature_dim) f32
    padded_weights:  list of (in_pad, out_pad) arrays (bf16 or f32), lane-padded
    padded_biases:   list of (1, out_pad) f32 arrays, lane-padded
    layer_dims:      list of true (in_dim, out_dim) per layer
    """
    B, feat = encoding.shape
    num_layers = len(padded_weights)
    assert len(padded_biases) == num_layers == len(layer_dims)
    assert layer_dims[0][0] == feat, "encoding width must match first layer"
    feature_out = layer_dims[-1][1]

    compute_dtype = padded_weights[0].dtype
    in_pad0 = padded_weights[0].shape[0]
    act_dtype = (compute_dtype
                 if (bf16_activations and compute_dtype != jnp.float32)
                 else jnp.float32)

    # Batch tiling: single step for small B (the intended use); otherwise a
    # large, 8-aligned tile to amortize the ~0.35 us/step grid overhead and
    # sit on the HBM-roofline plateau (512-1024 rows).
    if B <= batch_tile:
        tile = _round_up(B, 8)              # single grid step, no wasted rows
    else:
        tile = _round_up(batch_tile, 8)
    num_steps = pl.cdiv(B, tile)
    b_pad = num_steps * tile

    # Pad only when actually needed (avoid an extra HBM read+write pass).
    if b_pad == B and in_pad0 == feat:
        x = encoding
    else:
        x = jnp.pad(encoding, ((0, b_pad - B), (0, in_pad0 - feat)))

    x_spec = pl.BlockSpec((tile, in_pad0), lambda i: (i, 0))
    out_spec = pl.BlockSpec((tile, feature_out), lambda i: (i, 0))

    def _param_spec(shape):
        idx = lambda i: (0, 0)
        if single_buffer_params:
            # Params never change across grid steps -> one VMEM buffer is
            # enough.  (Per-step DMAs are already elided for constant
            # index_maps; this only trims VMEM, so it is opt-in.)
            try:
                return pl.BlockSpec(shape, idx, pipeline_mode=pl.Buffered(1))
            except TypeError:
                pass
        return pl.BlockSpec(shape, idx)

    param_specs, flat_params = [], []
    for w, b in zip(padded_weights, padded_biases):
        param_specs += [_param_spec(w.shape), _param_spec(b.shape)]
        flat_params += [w, b]

    # Honest advisory cost estimate (true dims for flops/transcendentals,
    # actual bytes moved for bytes_accessed, params counted once).
    flops = 2 * B * sum(i * o for i, o in layer_dims)
    transcendentals = B * sum(o for _, o in layer_dims[:-1])
    param_bytes = sum(p.size * p.dtype.itemsize for p in flat_params)
    act_bytes = (x.size + b_pad * feature_out) * encoding.dtype.itemsize
    cost = pl.CostEstimate(flops=flops, transcendentals=transcendentals,
                           bytes_accessed=act_bytes + param_bytes)

    # VMEM budget: double-buffered activation tiles + params + per-layer f32
    # intermediates, capped so it also fits v7x's 64 MiB physical VMEM.
    max_w = max(w.shape[1] for w in padded_weights)
    itemsize = encoding.dtype.itemsize
    tile_bytes = tile * (in_pad0 + feature_out) * itemsize
    inter_bytes = 2 * tile * max_w * 4           # two live f32 intermediates
    param_buf = (1 if single_buffer_params else 2) * param_bytes
    vmem_limit = int(min(48 * 1024 * 1024,
                         max(16 * 1024 * 1024,
                             2 * tile_bytes + param_buf + inter_bytes + (4 << 20))))

    kernel = functools.partial(_mlp_kernel, num_layers, compute_dtype, act_dtype)

    out = pl.pallas_call(
        kernel,
        out_shape=jax.ShapeDtypeStruct((b_pad, feature_out), encoding.dtype),
        grid_spec=pltpu.PrefetchScalarGridSpec(
            num_scalar_prefetch=0,
            grid=(num_steps,),
            in_specs=[x_spec] + param_specs,
            out_specs=out_spec,
        ),
        compiler_params=pltpu.CompilerParams(
            dimension_semantics=("parallel",),
            vmem_limit_bytes=vmem_limit),
        cost_estimate=cost,
    )(x, *flat_params)

    if b_pad != B:
        out = out[:B]          # cheap row slice only (lanes already narrow)
    return out


# ----------------------------------------------------------------------------
# init matching PredictModel (torch.nn.Linear default init), sizes:
#   [feature_dim] + [hidden_dim] * (num_layers - 1) + [feature_dim]
# ----------------------------------------------------------------------------
def init_predict_model_params(key, feature_dim, hidden_dim, num_layers):
    sizes = [feature_dim] + [hidden_dim] * (num_layers - 1) + [feature_dim]
    weights, biases = [], []
    for j in range(len(sizes) - 1):
        key, wk, bk = jax.random.split(key, 3)
        bound = 1.0 / float(sizes[j]) ** 0.5
        w = jax.random.uniform(wk, (sizes[j], sizes[j + 1]),
                               minval=-bound, maxval=bound, dtype=jnp.float32)
        b = jax.random.uniform(bk, (sizes[j + 1],),
                               minval=-bound, maxval=bound, dtype=jnp.float32)
        weights.append(w)
        biases.append(b)
    return weights, biases


def _reference_forward(encoding, weights, biases, compute_dtype=jnp.float32,
                       bf16_activations=False):
    """Pure-JAX reference mirroring the kernel's precision choices."""
    act_dtype = (compute_dtype
                 if (bf16_activations and compute_dtype != jnp.float32)
                 else jnp.float32)
    h = encoding.astype(jnp.float32)
    for l, (w, b) in enumerate(zip(weights, biases)):
        h = jnp.dot(h.astype(compute_dtype), w.astype(compute_dtype),
                    preferred_element_type=jnp.float32)
        h = h + jnp.reshape(b, (1, -1)).astype(jnp.float32)
        if l < len(weights) - 1:
            h = jnp.tanh(h.astype(act_dtype))
    return h.astype(jnp.float32)


if __name__ == "__main__":
    feature_dim = 32
    hidden_dim = 64
    num_layers = 3            # -> sizes [32, 64, 64, 32], 3 Linear layers
    batch = 300               # deliberately NOT a multiple of 8 or any tile

    key = jax.random.PRNGKey(0)
    key, xk = jax.random.split(key)
    encoding = jax.random.normal(xk, (batch, feature_dim), dtype=jnp.float32)
    weights, biases = init_predict_model_params(key, feature_dim, hidden_dim,
                                                num_layers)

    # --- f32 weights, single grid step (B <= batch_tile): exact semantics ---
    pw32, pb32, dims = pad_and_cast_params(weights, biases,
                                           compute_dtype=jnp.float32)
    out_f32 = jax.block_until_ready(
        predict_model_forward(encoding, pw32, pb32, dims))
    ref_f32 = _reference_forward(encoding, weights, biases)
    assert out_f32.shape == (batch, feature_dim)
    assert jnp.allclose(out_f32, ref_f32, atol=1e-4, rtol=1e-4), \
        "f32 single-step kernel mismatch vs reference"

    # --- f32 weights, multi-step grid (exercise tiling + row padding) -------
    out_ms = jax.block_until_ready(
        predict_model_forward(encoding, pw32, pb32, dims, batch_tile=128))
    assert out_ms.shape == (batch, feature_dim)
    assert jnp.allclose(out_ms, ref_f32, atol=1e-4, rtol=1e-4), \
        "f32 multi-step kernel mismatch vs reference"

    # --- bf16 weights (MXU-native), f32 accumulate / bias / tanh ------------
    pwbf, pbbf, dims = pad_and_cast_params(weights, biases,
                                           compute_dtype=jnp.bfloat16)
    out_bf = jax.block_until_ready(
        predict_model_forward(encoding, pwbf, pbbf, dims))
    ref_bf = _reference_forward(encoding, weights, biases,
                                compute_dtype=jnp.bfloat16)
    assert out_bf.shape == (batch, feature_dim)
    assert jnp.allclose(out_bf, ref_bf, atol=1e-3, rtol=1e-3), \
        "bf16 kernel mismatch vs bf16 reference"

    # --- bf16 weights + bf16 tanh (v6e / v7x fast path; skip on v5e) --------
    out_bf_act = jax.block_until_ready(
        predict_model_forward(encoding, pwbf, pbbf, dims,
                              bf16_activations=True))
    ref_bf_act = _reference_forward(encoding, weights, biases,
                                    compute_dtype=jnp.bfloat16,
                                    bf16_activations=True)
    assert out_bf_act.shape == (batch, feature_dim)
    assert jnp.allclose(out_bf_act, ref_bf_act, atol=5e-2, rtol=5e-2), \
        "bf16-activation kernel mismatch vs matching reference"

    print("KERNEL_OK")
</pallas_src>

<mosaic_0001>
module attributes {stable_mosaic.version = 11 : i64} {
  func.func @_mlp_kernel(%arg0: i32, %arg1: memref<304x128xf32, #tpu.memory_space<vmem>>, %arg2: memref<128x128xf32, #tpu.memory_space<vmem>>, %arg3: memref<1x128xf32, #tpu.memory_space<vmem>>, %arg4: memref<128x128xf32, #tpu.memory_space<vmem>>, %arg5: memref<1x128xf32, #tpu.memory_space<vmem>>, %arg6: memref<128x128xf32, #tpu.memory_space<vmem>>, %arg7: memref<1x128xf32, #tpu.memory_space<vmem>>, %arg8: memref<304x32xf32, #tpu.memory_space<vmem>>) attributes {dimension_semantics = [#tpu.dimension_semantics<parallel>], iteration_bounds = array<i64: 1>, scalar_prefetch = 0 : i64, scratch_operands = 0 : i64, tpu.core_type = #tpu.core_type<tc>, window_params = [{transform_indices = @transform_0, window_bounds = array<i64: 304, 128>}, {pipeline_mode = #tpu.pipeline_mode<synchronous>, transform_indices = @transform_1, window_bounds = array<i64: 128, 128>}, {pipeline_mode = #tpu.pipeline_mode<synchronous>, transform_indices = @transform_2, window_bounds = array<i64: 1, 128>}, {pipeline_mode = #tpu.pipeline_mode<synchronous>, transform_indices = @transform_3, window_bounds = array<i64: 128, 128>}, {pipeline_mode = #tpu.pipeline_mode<synchronous>, transform_indices = @transform_4, window_bounds = array<i64: 1, 128>}, {pipeline_mode = #tpu.pipeline_mode<synchronous>, transform_indices = @transform_5, window_bounds = array<i64: 128, 128>}, {pipeline_mode = #tpu.pipeline_mode<synchronous>, transform_indices = @transform_6, window_bounds = array<i64: 1, 128>}, {transform_indices = @transform_7, window_bounds = array<i64: 304, 32>}]} {
    %c0 = arith.constant 0 : index
    %c0_0 = arith.constant 0 : index
    %0 = vector.load %arg1[%c0, %c0_0] : memref<304x128xf32, #tpu.memory_space<vmem>>, vector<304x128xf32>
    %c0_1 = arith.constant 0 : index
    %c0_2 = arith.constant 0 : index
    %1 = vector.load %arg2[%c0_1, %c0_2] : memref<128x128xf32, #tpu.memory_space<vmem>>, vector<128x128xf32>
    %c0_3 = arith.constant 0 : index
    %c0_4 = arith.constant 0 : index
    %2 = vector.load %arg3[%c0_3, %c0_4] : memref<1x128xf32, #tpu.memory_space<vmem>>, vector<1x128xf32>
    %cst = arith.constant dense<0.000000e+00> : vector<304x128xf32>
    %3 = tpu.matmul %0, %1, %cst {dimension_numbers = #tpu.dot_dimension_numbers<[1], [0], [0], [1], [0, 0, 1, 1], [], []>} : vector<304x128xf32>, vector<128x128xf32>, vector<304x128xf32> -> vector<304x128xf32>
    %4 = vector.broadcast %2 : vector<1x128xf32> to vector<304x128xf32>
    %5 = arith.addf %3, %4 : vector<304x128xf32>
    %6 = math.tanh %5 : vector<304x128xf32>
    %c0_5 = arith.constant 0 : index
    %c0_6 = arith.constant 0 : index
    %7 = vector.load %arg4[%c0_5, %c0_6] : memref<128x128xf32, #tpu.memory_space<vmem>>, vector<128x128xf32>
    %c0_7 = arith.constant 0 : index
    %c0_8 = arith.constant 0 : index
    %8 = vector.load %arg5[%c0_7, %c0_8] : memref<1x128xf32, #tpu.memory_space<vmem>>, vector<1x128xf32>
    %cst_9 = arith.constant dense<0.000000e+00> : vector<304x128xf32>
    %9 = tpu.matmul %6, %7, %cst_9 {dimension_numbers = #tpu.dot_dimension_numbers<[1], [0], [0], [1], [0, 0, 1, 1], [], []>} : vector<304x128xf32>, vector<128x128xf32>, vector<304x128xf32> -> vector<304x128xf32>
    %10 = vector.broadcast %8 : vector<1x128xf32> to vector<304x128xf32>
    %11 = arith.addf %9, %10 : vector<304x128xf32>
    %12 = math.tanh %11 : vector<304x128xf32>
    %c0_10 = arith.constant 0 : index
    %c0_11 = arith.constant 0 : index
    %13 = vector.load %arg6[%c0_10, %c0_11] : memref<128x128xf32, #tpu.memory_space<vmem>>, vector<128x128xf32>
    %c0_12 = arith.constant 0 : index
    %c0_13 = arith.constant 0 : index
    %14 = vector.load %arg7[%c0_12, %c0_13] : memref<1x128xf32, #tpu.memory_space<vmem>>, vector<1x128xf32>
    %cst_14 = arith.constant dense<0.000000e+00> : vector<304x128xf32>
    %15 = tpu.matmul %12, %13, %cst_14 {dimension_numbers = #tpu.dot_dimension_numbers<[1], [0], [0], [1], [0, 0, 1, 1], [], []>} : vector<304x128xf32>, vector<128x128xf32>, vector<304x128xf32> -> vector<304x128xf32>
    %16 = vector.broadcast %14 : vector<1x128xf32> to vector<304x128xf32>
    %17 = arith.addf %15, %16 : vector<304x128xf32>
    %18 = vector.extract_strided_slice %17 {offsets = [0, 0], sizes = [304, 32], strides = [1, 1]} : vector<304x128xf32> to vector<304x32xf32>
    %c0_15 = arith.constant 0 : index
    %c0_16 = arith.constant 0 : index
    %19 = vector.load %arg8[%c0_15, %c0_16] : memref<304x32xf32, #tpu.memory_space<vmem>>, vector<304x32xf32>
    tpu.vector_store %arg8[%c0_15, %c0_16], %18 {strides = array<i32>} : memref<304x32xf32, #tpu.memory_space<vmem>>, vector<304x32xf32>,
    return
  }
  func.func @transform_0(%arg0: i32) -> (i32, i32) {
    %c0_i32 = arith.constant 0 : i32
    %c0_i32_0 = arith.constant 0 : i32
    return %arg0, %c0_i32 : i32, i32
  }
  func.func @transform_1(%arg0: i32) -> (i32, i32) {
    %c0_i32 = arith.constant 0 : i32
    %c0_i32_0 = arith.constant 0 : i32
    %c0_i32_1 = arith.constant 0 : i32
    return %c0_i32, %c0_i32_0 : i32, i32
  }
  func.func @transform_2(%arg0: i32) -> (i32, i32) {
    %c0_i32 = arith.constant 0 : i32
    %c0_i32_0 = arith.constant 0 : i32
    %c0_i32_1 = arith.constant 0 : i32
    return %c0_i32, %c0_i32_0 : i32, i32
  }
  func.func @transform_3(%arg0: i32) -> (i32, i32) {
    %c0_i32 = arith.constant 0 : i32
    %c0_i32_0 = arith.constant 0 : i32
    %c0_i32_1 = arith.constant 0 : i32
    return %c0_i32, %c0_i32_0 : i32, i32
  }
  func.func @transform_4(%arg0: i32) -> (i32, i32) {
    %c0_i32 = arith.constant 0 : i32
    %c0_i32_0 = arith.constant 0 : i32
    %c0_i32_1 = arith.constant 0 : i32
    return %c0_i32, %c0_i32_0 : i32, i32
  }
  func.func @transform_5(%arg0: i32) -> (i32, i32) {
    %c0_i32 = arith.constant 0 : i32
    %c0_i32_0 = arith.constant 0 : i32
    %c0_i32_1 = arith.constant 0 : i32
    return %c0_i32, %c0_i32_0 : i32, i32
  }
  func.func @transform_6(%arg0: i32) -> (i32, i32) {
    %c0_i32 = arith.constant 0 : i32
    %c0_i32_0 = arith.constant 0 : i32
    %c0_i32_1 = arith.constant 0 : i32
    return %c0_i32, %c0_i32_0 : i32, i32
  }
  func.func @transform_7(%arg0: i32) -> (i32, i32) {
    %c0_i32 = arith.constant 0 : i32
    %c0_i32_0 = arith.constant 0 : i32
    return %arg0, %c0_i32 : i32, i32
  }
}

</mosaic_0001>

<llo_original>
// kernel: tpu_custom_call.1
$region0: #{tpu_custom_call.1}
  #allocation0 [shape = 'u32[]', space=smem, size = 0x4, offset = 0x4, fixed_abs, tag = 'smem constant byte address 0x4 - core index']
  #allocation1 [shape = 'u32[144,128]{1,0:T(1,128)}', space=vmem, size = 0x12000, scoped, tag = 'internal scratch']
  %s0 = inlined_call_operand.hbm [shape: f32[304,128], index: 0, kind: input, shape index: {}]
  %s1 = inlined_call_operand.hbm [shape: f32[128,128], index: 1, kind: input, shape index: {}]
  %s2 = inlined_call_operand.vmem [shape: f32[1,128], index: 2, kind: input, shape index: {}]
  %s3 = inlined_call_operand.hbm [shape: f32[128,128], index: 3, kind: input, shape index: {}]
  %s4 = inlined_call_operand.vmem [shape: f32[1,128], index: 4, kind: input, shape index: {}]
  %s5 = inlined_call_operand.hbm [shape: f32[128,128], index: 5, kind: input, shape index: {}]
  %s6 = inlined_call_operand.vmem [shape: f32[1,128], index: 6, kind: input, shape index: {}]
  %s7 = inlined_call_operand.vmem [shape: f32[304,32], index: 7, kind: output, shape index: {}]
  %s8 = sld [smem:[#allocation0]]
  $region54: #{tpu_custom_call.1} parent=0
    _
  %s10 = ssub.s32 1, %s8
  %s11 = scalar_select 0, %s10, %s8
  $region1: #{tpu_custom_call.1} parent=0
    #allocation2 [shape = 'u8[155648]{0}', space=vmem, size = 0x26000, scoped, tag = 'input window, operand 0, single buffered']
    #allocation3 [shape = 's32[1]{0}', space=sflag, size = 0x4, scoped, tag = 'scoped memory for tpu_custom_call.1']
    #allocation4 [shape = 'u8[65536]{0}', space=vmem, size = 0x10000, scoped, tag = 'input window, operand 1, single buffered']
    #allocation5 [shape = 's32[1]{0}', space=sflag, size = 0x4, scoped, tag = 'scoped memory for tpu_custom_call.1']
    #allocation6 [shape = 'u8[65536]{0}', space=vmem, size = 0x10000, scoped, tag = 'input window, operand 3, single buffered']
    #allocation7 [shape = 'u8[65536]{0}', space=vmem, size = 0x10000, scoped, tag = 'input window, operand 5, single buffered']
    #allocation8 [shape = 's32[1]{0}', space=sflag, size = 0x4, scoped, tag = 'scoped memory for tpu_custom_call.1']
    %12 = vsyncpa [#allocation3], 0
    %13 = vsyncpa [#allocation5], 0
    %14 = vsyncpa [#allocation8], 0
    // Predicated region
    $region2: #{tpu_custom_call.1} parent=1 // pred_check
      _
    $region3: #{tpu_custom_call.1} parent=1 // pred_check_branch
      %16 = sbr.rel (0) target = $region5
    $region4: #{tpu_custom_call.1} parent=1 // pred_region
      %s18 = ssub.s32 4864, 4864
      %19 = vsyncadd [#allocation3], %s18
      %s20 = sshll.u32 [#allocation2], 4
      %s21 = int_to_ptr.vmem [resolvable:$true] %s20
      %26 = dma.hbm_to_vmem [thread:$0]  %s0, 4864, %s21, [#allocation3], 128, 128, 8
    $region5: #{tpu_custom_call.1} parent=1 // pred_fallthru
      _
    // Predicated region
    $region6: #{tpu_custom_call.1} parent=1 // pred_check
      _
    $region7: #{tpu_custom_call.1} parent=1 // pred_check_branch
      %28 = sbr.rel (0) target = $region9
    $region8: #{tpu_custom_call.1} parent=1 // pred_region
      %s30 = ssub.s32 2048, 2048
      %31 = vsyncadd [#allocation5], %s30
      %s32 = sshll.u32 [#allocation4], 4
      %s33 = int_to_ptr.vmem [resolvable:$true] %s32
      %38 = dma.hbm_to_vmem [thread:$0]  %s1, 2048, %s33, [#allocation5], 128, 128, 8
    $region9: #{tpu_custom_call.1} parent=1 // pred_fallthru
      _
    // Predicated region
    $region10: #{tpu_custom_call.1} parent=1 // pred_check
      _
    $region11: #{tpu_custom_call.1} parent=1 // pred_check_branch
      %40 = sbr.rel (0) target = $region13
    $region12: #{tpu_custom_call.1} parent=1 // pred_region
      _
    $region13: #{tpu_custom_call.1} parent=1 // pred_fallthru
      _
    // Predicated region
    $region14: #{tpu_custom_call.1} parent=1 // pred_check
      _
    $region15: #{tpu_custom_call.1} parent=1 // pred_check_branch
      %42 = sbr.rel (0) target = $region17
    $region16: #{tpu_custom_call.1} parent=1 // pred_region
      %s44 = ssub.s32 2048, 2048
      %45 = vsyncadd [#allocation5], %s44
      %s46 = sshll.u32 [#allocation6], 4
      %s47 = int_to_ptr.vmem [resolvable:$true] %s46
      %52 = dma.hbm_to_vmem [thread:$0]  %s3, 2048, %s47, [#allocation5], 128, 128, 8
    $region17: #{tpu_custom_call.1} parent=1 // pred_fallthru
      _
    // Predicated region
    $region18: #{tpu_custom_call.1} parent=1 // pred_check
      _
    $region19: #{tpu_custom_call.1} parent=1 // pred_check_branch
      %54 = sbr.rel (0) target = $region21
    $region20: #{tpu_custom_call.1} parent=1 // pred_region
      _
    $region21: #{tpu_custom_call.1} parent=1 // pred_fallthru
      _
    // Predicated region
    $region22: #{tpu_custom_call.1} parent=1 // pred_check
      _
    $region23: #{tpu_custom_call.1} parent=1 // pred_check_branch
      %56 = sbr.rel (0) target = $region25
    $region24: #{tpu_custom_call.1} parent=1 // pred_region
      %s58 = ssub.s32 2048, 2048
      %59 = vsyncadd [#allocation8], %s58
      %s60 = sshll.u32 [#allocation7], 4
      %s61 = int_to_ptr.vmem [resolvable:$true] %s60
      %66 = dma.hbm_to_vmem [thread:$0]  %s5, 2048, %s61, [#allocation8], 128, 128, 8
    $region25: #{tpu_custom_call.1} parent=1 // pred_fallthru
      _
    // Predicated region
    $region26: #{tpu_custom_call.1} parent=1 // pred_check
      _
    $region27: #{tpu_custom_call.1} parent=1 // pred_check_branch
      %68 = sbr.rel (0) target = $region29
    $region28: #{tpu_custom_call.1} parent=1 // pred_region
      _
    $region29: #{tpu_custom_call.1} parent=1 // pred_fallthru
      _
    // Predicated region
    $region30: #{tpu_custom_call.1} parent=1 // pred_check
      _
    $region31: #{tpu_custom_call.1} parent=1 // pred_check_branch
      %70 = sbr.rel (0) target = $region33
    $region32: #{tpu_custom_call.1} parent=1 // pred_region
      %71 = dma.done [#allocation3], 4864
    $region33: #{tpu_custom_call.1} parent=1 // pred_fallthru
      _
    // Predicated region
    $region34: #{tpu_custom_call.1} parent=1 // pred_check
      _
    $region35: #{tpu_custom_call.1} parent=1 // pred_check_branch
      %73 = sbr.rel (0) target = $region37
    $region36: #{tpu_custom_call.1} parent=1 // pred_region
      %74 = dma.done [#allocation5], 2048
    $region37: #{tpu_custom_call.1} parent=1 // pred_fallthru
      _
    // Predicated region
    $region38: #{tpu_custom_call.1} parent=1 // pred_check
      _
    $region39: #{tpu_custom_call.1} parent=1 // pred_check_branch
      %76 = sbr.rel (0) target = $region41
    $region40: #{tpu_custom_call.1} parent=1 // pred_region
      %77 = dma.done [#allocation5], 2048
    $region41: #{tpu_custom_call.1} parent=1 // pred_fallthru
      _
    // Predicated region
    $region42: #{tpu_custom_call.1} parent=1 // pred_check
      _
    $region43: #{tpu_custom_call.1} parent=1 // pred_check_branch
      %79 = sbr.rel (0) target = $region45
    $region44: #{tpu_custom_call.1} parent=1 // pred_region
      %80 = dma.done [#allocation8], 2048
    $region45: #{tpu_custom_call.1} parent=1 // pred_fallthru
      _
    %v81 = vld [vmem:[#allocation2] sm:$0xff]
    %v82 = vld [vmem:[#allocation2 + $0x8] sm:$0xff]
    %v83 = vld [vmem:[#allocation2 + $0x10] sm:$0xff]
    %v84 = vld [vmem:[#allocation2 + $0x18] sm:$0xff]
    %v85 = vld [vmem:[#allocation2 + $0x20] sm:$0xff]
    %v86 = vld [vmem:[#allocation2 + $0x28] sm:$0xff]
    %v87 = vld [vmem:[#allocation2 + $0x30] sm:$0xff]
    %v88 = vld [vmem:[#allocation2 + $0x38] sm:$0xff]
    %v89 = vld [vmem:[#allocation2 + $0x40] sm:$0xff]
    %v90 = vld [vmem:[#allocation2 + $0x48] sm:$0xff]
    %v91 = vld [vmem:[#allocation2 + $0x50] sm:$0xff]
    %v92 = vld [vmem:[#allocation2 + $0x58] sm:$0xff]
    %v93 = vld [vmem:[#allocation2 + $0x60] sm:$0xff]
    %v94 = vld [vmem:[#allocation2 + $0x68] sm:$0xff]
    %v95 = vld [vmem:[#allocation2 + $0x70] sm:$0xff]
    %v96 = vld [vmem:[#allocation2 + $0x78] sm:$0xff]
    %v97 = vld [vmem:[#allocation2 + $0x80] sm:$0xff]
    %v98 = vld [vmem:[#allocation2 + $0x88] sm:$0xff]
    %v99 = vld [vmem:[#allocation2 + $0x90] sm:$0xff]
    %v100 = vld [vmem:[#allocation2 + $0x98] sm:$0xff]
    %v101 = vld [vmem:[#allocation2 + $0xa0] sm:$0xff]
    %v102 = vld [vmem:[#allocation2 + $0xa8] sm:$0xff]
    %v103 = vld [vmem:[#allocation2 + $0xb0] sm:$0xff]
    %v104 = vld [vmem:[#allocation2 + $0xb8] sm:$0xff]
    %v105 = vld [vmem:[#allocation2 + $0xc0] sm:$0xff]
    %v106 = vld [vmem:[#allocation2 + $0xc8] sm:$0xff]
    %v107 = vld [vmem:[#allocation2 + $0xd0] sm:$0xff]
    %v108 = vld [vmem:[#allocation2 + $0xd8] sm:$0xff]
    %v109 = vld [vmem:[#allocation2 + $0xe0] sm:$0xff]
    %v110 = vld [vmem:[#allocation2 + $0xe8] sm:$0xff]
    %v111 = vld [vmem:[#allocation2 + $0xf0] sm:$0xff]
    %v112 = vld [vmem:[#allocation2 + $0xf8] sm:$0xff]
    %v113 = vld [vmem:[#allocation2 + $0x100] sm:$0xff]
    %v114 = vld [vmem:[#allocation2 + $0x108] sm:$0xff]
    %v115 = vld [vmem:[#allocation2 + $0x110] sm:$0xff]
    %v116 = vld [vmem:[#allocation2 + $0x118] sm:$0xff]
    %v117 = vld [vmem:[#allocation2 + $0x120] sm:$0xff]
    %v118 = vld [vmem:[#allocation2 + $0x128] sm:$0xff]
    %v119 = vld [vmem:[#allocation4] sm:$0xff]
    %v120 = vld [vmem:[#allocation4 + $0x8] sm:$0xff]
    %v121 = vld [vmem:[#allocation4 + $0x10] sm:$0xff]
    %v122 = vld [vmem:[#allocation4 + $0x18] sm:$0xff]
    %v123 = vld [vmem:[#allocation4 + $0x20] sm:$0xff]
    %v124 = vld [vmem:[#allocation4 + $0x28] sm:$0xff]
    %v125 = vld [vmem:[#allocation4 + $0x30] sm:$0xff]
    %v126 = vld [vmem:[#allocation4 + $0x38] sm:$0xff]
    %v127 = vld [vmem:[#allocation4 + $0x40] sm:$0xff]
    %v128 = vld [vmem:[#allocation4 + $0x48] sm:$0xff]
    %v129 = vld [vmem:[#allocation4 + $0x50] sm:$0xff]
    %v130 = vld [vmem:[#allocation4 + $0x58] sm:$0xff]
    %v131 = vld [vmem:[#allocation4 + $0x60] sm:$0xff]
    %v132 = vld [vmem:[#allocation4 + $0x68] sm:$0xff]
    %v133 = vld [vmem:[#allocation4 + $0x70] sm:$0xff]
    %v134 = vld [vmem:[#allocation4 + $0x78] sm:$0xff]
    %v135 = vld [vmem:[%s2] sm:$0x1]
    %v137 = vlaneseq
    %v138 = vshrl.u32 %v137, 7
    %v139 = vsub.s32 0, %v138
    %v140 = vrot.slane %v135, %v139
    %142 = vmatprep.subr.mxu0 0.0
    %143 = vmatpush1.msra.mxu0 %v119
    %144 = vmatprep.subr.mxu0 0.0
    %145 = vmatpush1.msra.mxu0 %v120
    %146 = vmatprep.subr.mxu0 0.0
    %147 = vmatpush1.msra.mxu0 %v121
    %148 = vmatprep.subr.mxu0 0.0
    %149 = vmatpush1.msra.mxu0 %v122
    %150 = vmatprep.subr.mxu0 0.0
    %151 = vmatpush1.msra.mxu0 %v123
    %152 = vmatprep.subr.mxu0 0.0
    %153 = vmatpush1.msra.mxu0 %v124
    %154 = vmatprep.subr.mxu0 0.0
    %155 = vmatpush1.msra.mxu0 %v125
    %156 = vmatprep.subr.mxu0 0.0
    %157 = vmatpush1.msra.mxu0 %v126
    %158 = vmatprep.subr.mxu0 0.0
    %159 = vmatpush1.msra.mxu0 %v127
    %160 = vmatprep.subr.mxu0 0.0
    %161 = vmatpush1.msra.mxu0 %v128
    %162 = vmatprep.subr.mxu0 0.0
    %163 = vmatpush1.msra.mxu0 %v129
    %164 = vmatprep.subr.mxu0 0.0
    %165 = vmatpush1.msra.mxu0 %v130
    %166 = vmatprep.subr.mxu0 0.0
    %167 = vmatpush1.msra.mxu0 %v131
    %168 = vmatprep.subr.mxu0 0.0
    %169 = vmatpush1.msra.mxu0 %v132
    %170 = vmatprep.subr.mxu0 0.0
    %171 = vmatpush1.msra.mxu0 %v133
    %172 = vmatprep.subr.mxu0 0.0
    %173 = vmatpush1.msra.mxu0 %v134
    %174 = vmatprep.subr.mxu0 0.0
    %175 = vmatpush1.msra.mxu0 0.0
    %176 = vmatprep.subr.mxu0 0.0
    %177 = vmatpush1.msra.mxu0 0.0
    %178 = vmatprep.subr.mxu0 0.0
    %179 = vmatpush1.msra.mxu0 0.0
    %180 = vmatprep.subr.mxu0 0.0
    %181 = vmatpush1.msra.mxu0 0.0
    %182 = vmatprep.subr.mxu0 0.0
    %183 = vmatpush1.msra.mxu0 0.0
    %184 = vmatprep.subr.mxu0 0.0
    %185 = vmatpush1.msra.mxu0 0.0
    %186 = vmatprep.subr.mxu0 0.0
    %187 = vmatpush1.msra.mxu0 0.0
    %188 = vmatprep.subr.mxu0 0.0
    %189 = vmatpush1.msra.mxu0 0.0
    %190 = vmatprep.subr.mxu0 0.0
    %191 = vmatpush1.msra.mxu0 0.0
    %192 = vmatprep.subr.mxu0 0.0
    %193 = vmatpush1.msra.mxu0 0.0
    %194 = vmatprep.subr.mxu0 0.0
    %195 = vmatpush1.msra.mxu0 0.0
    %196 = vmatprep.subr.mxu0 0.0
    %197 = vmatpush1.msra.mxu0 0.0
    %198 = vmatprep.subr.mxu0 0.0
    %199 = vmatpush1.msra.mxu0 0.0
    %200 = vmatprep.subr.mxu0 0.0
    %201 = vmatpush1.msra.mxu0 0.0
    %202 = vmatprep.subr.mxu0 0.0
    %203 = vmatpush1.msra.mxu0 0.0
    %204 = vmatprep.subr.mxu0 0.0
    %205 = vmatpush1.msra.mxu0 0.0
    %206 = vmatprep.mubr.f32.mxu0 0.0
    %207 = vmatmul.mubr.f32.gmra.mrb[0].mxu0 %v81
    %v208 = vpop.f32.mrb[0].mxu0
    %v209 = vadd.f32 %v140, %v208
    %v210 = vpop.f32.mrb[0].mxu0
    %211 = vmatprep.mubr.f32.mxu0 0.0
    %212 = vmatmul.mubr.f32.gmra.mrb[0].mxu0 %v82
    %v213 = vpop.f32.mrb[0].mxu0
    %v214 = vadd.f32 %v140, %v213
    %v215 = vpop.f32.mrb[0].mxu0
    %216 = vmatprep.mubr.f32.mxu0 0.0
    %217 = vmatmul.mubr.f32.gmra.mrb[0].mxu0 %v83
    %v218 = vpop.f32.mrb[0].mxu0
    %v219 = vadd.f32 %v140, %v218
    %v220 = vpop.f32.mrb[0].mxu0
    %221 = vmatprep.mubr.f32.mxu0 0.0
    %222 = vmatmul.mubr.f32.gmra.mrb[0].mxu0 %v84
    %v223 = vpop.f32.mrb[0].mxu0
    %v224 = vadd.f32 %v140, %v223
    %v225 = vpop.f32.mrb[0].mxu0
    %226 = vmatprep.mubr.f32.mxu0 0.0
    %227 = vmatmul.mubr.f32.gmra.mrb[0].mxu0 %v85
    %v228 = vpop.f32.mrb[0].mxu0
    %v229 = vadd.f32 %v140, %v228
    %v230 = vpop.f32.mrb[0].mxu0
    %231 = vmatprep.mubr.f32.mxu0 0.0
    %232 = vmatmul.mubr.f32.gmra.mrb[0].mxu0 %v86
    %v233 = vpop.f32.mrb[0].mxu0
    %v234 = vadd.f32 %v140, %v233
    %v235 = vpop.f32.mrb[0].mxu0
    %236 = vmatprep.mubr.f32.mxu0 0.0
    %237 = vmatmul.mubr.f32.gmra.mrb[0].mxu0 %v87
    %v238 = vpop.f32.mrb[0].mxu0
    %v239 = vadd.f32 %v140, %v238
    %v240 = vpop.f32.mrb[0].mxu0
    %241 = vmatprep.mubr.f32.mxu0 0.0
    %242 = vmatmul.mubr.f32.gmra.mrb[0].mxu0 %v88
    %v243 = vpop.f32.mrb[0].mxu0
    %v244 = vadd.f32 %v140, %v243
    %v245 = vpop.f32.mrb[0].mxu0
    %246 = vmatprep.mubr.f32.mxu0 0.0
    %247 = vmatmul.mubr.f32.gmra.mrb[0].mxu0 %v89
    %v248 = vpop.f32.mrb[0].mxu0
    %v249 = vadd.f32 %v140, %v248
    %v250 = vpop.f32.mrb[0].mxu0
    %251 = vmatprep.mubr.f32.mxu0 0.0
    %252 = vmatmul.mubr.f32.gmra.mrb[0].mxu0 %v90
    %v253 = vpop.f32.mrb[0].mxu0
    %v254 = vadd.f32 %v140, %v253
    %v255 = vpop.f32.mrb[0].mxu0
    %256 = vmatprep.mubr.f32.mxu0 0.0
    %257 = vmatmul.mubr.f32.gmra.mrb[0].mxu0 %v91
    %v258 = vpop.f32.mrb[0].mxu0
    %v259 = vadd.f32 %v140, %v258
    %v260 = vpop.f32.mrb[0].mxu0
    %261 = vmatprep.mubr.f32.mxu0 0.0
    %262 = vmatmul.mubr.f32.gmra.mrb[0].mxu0 %v92
    %v263 = vpop.f32.mrb[0].mxu0
    %v264 = vadd.f32 %v140, %v263
    %v265 = vpop.f32.mrb[0].mxu0
    %266 = vmatprep.mubr.f32.mxu0 0.0
    %267 = vmatmul.mubr.f32.gmra.mrb[0].mxu0 %v93
    %v268 = vpop.f32.mrb[0].mxu0
    %v269 = vadd.f32 %v140, %v268
    %v270 = vpop.f32.mrb[0].mxu0
    %271 = vmatprep.mubr.f32.mxu0 0.0
    %272 = vmatmul.mubr.f32.gmra.mrb[0].mxu0 %v94
    %v273 = vpop.f32.mrb[0].mxu0
    %v274 = vadd.f32 %v140, %v273
    %v275 = vpop.f32.mrb[0].mxu0
    %276 = vmatprep.mubr.f32.mxu0 0.0
    %277 = vmatmul.mubr.f32.gmra.mrb[0].mxu0 %v95
    %v278 = vpop.f32.mrb[0].mxu0
    %v279 = vadd.f32 %v140, %v278
    %v280 = vpop.f32.mrb[0].mxu0
    %281 = vmatprep.mubr.f32.mxu0 0.0
    %282 = vmatmul.mubr.f32.gmra.mrb[0].mxu0 %v96
    %v283 = vpop.f32.mrb[0].mxu0
    %v284 = vadd.f32 %v140, %v283
    %v285 = vpop.f32.mrb[0].mxu0
    %286 = vmatprep.mubr.f32.mxu0 0.0
    %287 = vmatmul.mubr.f32.gmra.mrb[0].mxu0 %v97
    %v288 = vpop.f32.mrb[0].mxu0
    %v289 = vadd.f32 %v140, %v288
    %v290 = vpop.f32.mrb[0].mxu0
    %291 = vmatprep.mubr.f32.mxu0 0.0
    %292 = vmatmul.mubr.f32.gmra.mrb[0].mxu0 %v98
    %v293 = vpop.f32.mrb[0].mxu0
    %v294 = vadd.f32 %v140, %v293
    %v295 = vpop.f32.mrb[0].mxu0
    %296 = vmatprep.mubr.f32.mxu0 0.0
    %297 = vmatmul.mubr.f32.gmra.mrb[0].mxu0 %v99
    %v298 = vpop.f32.mrb[0].mxu0
    %v299 = vadd.f32 %v140, %v298
    %v300 = vpop.f32.mrb[0].mxu0
    %301 = vmatprep.mubr.f32.mxu0 0.0
    %302 = vmatmul.mubr.f32.gmra.mrb[0].mxu0 %v100
    %v303 = vpop.f32.mrb[0].mxu0
    %v304 = vadd.f32 %v140, %v303
    %v305 = vpop.f32.mrb[0].mxu0
    %306 = vmatprep.mubr.f32.mxu0 0.0
    %307 = vmatmul.mubr.f32.gmra.mrb[0].mxu0 %v101
    %v308 = vpop.f32.mrb[0].mxu0
    %v309 = vadd.f32 %v140, %v308
    %v310 = vpop.f32.mrb[0].mxu0
    %311 = vmatprep.mubr.f32.mxu0 0.0
    %312 = vmatmul.mubr.f32.gmra.mrb[0].mxu0 %v102
    %v313 = vpop.f32.mrb[0].mxu0
    %v314 = vadd.f32 %v140, %v313
    %v315 = vpop.f32.mrb[0].mxu0
    %316 = vmatprep.mubr.f32.mxu0 0.0
    %317 = vmatmul.mubr.f32.gmra.mrb[0].mxu0 %v103
    %v318 = vpop.f32.mrb[0].mxu0
    %v319 = vadd.f32 %v140, %v318
    %v320 = vpop.f32.mrb[0].mxu0
    %321 = vmatprep.mubr.f32.mxu0 0.0
    %322 = vmatmul.mubr.f32.gmra.mrb[0].mxu0 %v104
    %v323 = vpop.f32.mrb[0].mxu0
    %v324 = vadd.f32 %v140, %v323
    %v325 = vpop.f32.mrb[0].mxu0
    %326 = vmatprep.mubr.f32.mxu0 0.0
    %327 = vmatmul.mubr.f32.gmra.mrb[0].mxu0 %v105
    %v328 = vpop.f32.mrb[0].mxu0
    %v329 = vadd.f32 %v140, %v328
    %v330 = vpop.f32.mrb[0].mxu0
    %331 = vmatprep.mubr.f32.mxu0 0.0
    %332 = vmatmul.mubr.f32.gmra.mrb[0].mxu0 %v106
    %v333 = vpop.f32.mrb[0].mxu0
    %v334 = vadd.f32 %v140, %v333
    %v335 = vpop.f32.mrb[0].mxu0
    %336 = vmatprep.mubr.f32.mxu0 0.0
    %337 = vmatmul.mubr.f32.gmra.mrb[0].mxu0 %v107
    %v338 = vpop.f32.mrb[0].mxu0
    %v339 = vadd.f32 %v140, %v338
    %v340 = vpop.f32.mrb[0].mxu0
    %341 = vmatprep.mubr.f32.mxu0 0.0
    %342 = vmatmul.mubr.f32.gmra.mrb[0].mxu0 %v108
    %v343 = vpop.f32.mrb[0].mxu0
    %v344 = vadd.f32 %v140, %v343
    %v345 = vpop.f32.mrb[0].mxu0
    %346 = vmatprep.mubr.f32.mxu0 0.0
    %347 = vmatmul.mubr.f32.gmra.mrb[0].mxu0 %v109
    %v348 = vpop.f32.mrb[0].mxu0
    %v349 = vadd.f32 %v140, %v348
    %v350 = vpop.f32.mrb[0].mxu0
    %351 = vmatprep.mubr.f32.mxu0 0.0
    %352 = vmatmul.mubr.f32.gmra.mrb[0].mxu0 %v110
    %v353 = vpop.f32.mrb[0].mxu0
    %v354 = vadd.f32 %v140, %v353
    %v355 = vpop.f32.mrb[0].mxu0
    %356 = vmatprep.mubr.f32.mxu0 0.0
    %357 = vmatmul.mubr.f32.gmra.mrb[0].mxu0 %v111
    %v358 = vpop.f32.mrb[0].mxu0
    %v359 = vadd.f32 %v140, %v358
    %v360 = vpop.f32.mrb[0].mxu0
    %361 = vmatprep.mubr.f32.mxu0 0.0
    %362 = vmatmul.mubr.f32.gmra.mrb[0].mxu0 %v112
    %v363 = vpop.f32.mrb[0].mxu0
    %v364 = vadd.f32 %v140, %v363
    %v365 = vpop.f32.mrb[0].mxu0
    %366 = vmatprep.mubr.f32.mxu0 0.0
    %367 = vmatmul.mubr.f32.gmra.mrb[0].mxu0 %v113
    %v368 = vpop.f32.mrb[0].mxu0
    %v369 = vadd.f32 %v140, %v368
    %v370 = vpop.f32.mrb[0].mxu0
    %371 = vmatprep.mubr.f32.mxu0 0.0
    %372 = vmatmul.mubr.f32.gmra.mrb[0].mxu0 %v114
    %v373 = vpop.f32.mrb[0].mxu0
    %v374 = vadd.f32 %v140, %v373
    %v375 = vpop.f32.mrb[0].mxu0
    %376 = vmatprep.mubr.f32.mxu0 0.0
    %377 = vmatmul.mubr.f32.gmra.mrb[0].mxu0 %v115
    %v378 = vpop.f32.mrb[0].mxu0
    %v379 = vadd.f32 %v140, %v378
    %v380 = vpop.f32.mrb[0].mxu0
    %381 = vmatprep.mubr.f32.mxu0 0.0
    %382 = vmatmul.mubr.f32.gmra.mrb[0].mxu0 %v116
    %v383 = vpop.f32.mrb[0].mxu0
    %v384 = vadd.f32 %v140, %v383
    %v385 = vpop.f32.mrb[0].mxu0
    %386 = vmatprep.mubr.f32.mxu0 0.0
    %387 = vmatmul.mubr.f32.gmra.mrb[0].mxu0 %v117
    %v388 = vpop.f32.mrb[0].mxu0
    %v389 = vadd.f32 %v140, %v388
    %v390 = vpop.f32.mrb[0].mxu0
    %391 = vmatprep.mubr.f32.mxu0 0.0
    %392 = vmatmul.mubr.f32.gmra.mrb[0].mxu0 %v118
    %v393 = vpop.f32.mrb[0].mxu0
    %v394 = vadd.f32 %v140, %v393
    %v395 = vpop.f32.mrb[0].mxu0
    %396 = vdwg.mxu0
    %v397 = vtanh.pop %v209
    %v398 = vtanh.pop %v214
    %v399 = vtanh.pop %v219
    %v400 = vtanh.pop %v224
    %v401 = vtanh.pop %v229
    %v402 = vtanh.pop %v234
    %v403 = vtanh.pop %v239
    %v404 = vtanh.pop %v244
    %v405 = vtanh.pop %v249
    %v406 = vtanh.pop %v254
    %v407 = vtanh.pop %v259
    %v408 = vtanh.pop %v264
    %v409 = vtanh.pop %v269
    %v410 = vtanh.pop %v274
    %v411 = vtanh.pop %v279
    %v412 = vtanh.pop %v284
    %v413 = vtanh.pop %v289
    %v414 = vtanh.pop %v294
    %v415 = vtanh.pop %v299
    %v416 = vtanh.pop %v304
    %v417 = vtanh.pop %v309
    %v418 = vtanh.pop %v314
    %v419 = vtanh.pop %v319
    %v420 = vtanh.pop %v324
    %v421 = vtanh.pop %v329
    %v422 = vtanh.pop %v334
    %v423 = vtanh.pop %v339
    %v424 = vtanh.pop %v344
    %v425 = vtanh.pop %v349
    %v426 = vtanh.pop %v354
    %v427 = vtanh.pop %v359
    %v428 = vtanh.pop %v364
    %v429 = vtanh.pop %v369
    %v430 = vtanh.pop %v374
    %v431 = vtanh.pop %v379
    %v432 = vtanh.pop %v384
    %v433 = vtanh.pop %v389
    %v434 = vtanh.pop %v394
    %v435 = vld [vmem:[#allocation6] sm:$0xff]
    %v436 = vld [vmem:[#allocation6 + $0x8] sm:$0xff]
    %v437 = vld [vmem:[#allocation6 + $0x10] sm:$0xff]
    %v438 = vld [vmem:[#allocation6 + $0x18] sm:$0xff]
    %v439 = vld [vmem:[#allocation6 + $0x20] sm:$0xff]
    %v440 = vld [vmem:[#allocation6 + $0x28] sm:$0xff]
    %v441 = vld [vmem:[#allocation6 + $0x30] sm:$0xff]
    %v442 = vld [vmem:[#allocation6 + $0x38] sm:$0xff]
    %v443 = vld [vmem:[#allocation6 + $0x40] sm:$0xff]
    %v444 = vld [vmem:[#allocation6 + $0x48] sm:$0xff]
    %v445 = vld [vmem:[#allocation6 + $0x50] sm:$0xff]
    %v446 = vld [vmem:[#allocation6 + $0x58] sm:$0xff]
    %v447 = vld [vmem:[#allocation6 + $0x60] sm:$0xff]
    %v448 = vld [vmem:[#allocation6 + $0x68] sm:$0xff]
    %v449 = vld [vmem:[#allocation6 + $0x70] sm:$0xff]
    %v450 = vld [vmem:[#allocation6 + $0x78] sm:$0xff]
    %v451 = vld [vmem:[%s4] sm:$0x1]
    %v453 = vlaneseq
    %v454 = vshrl.u32 %v453, 7
    %v455 = vsub.s32 0, %v454
    %v456 = vrot.slane %v451, %v455
    %458 = vmatprep.subr.mxu0 0.0
    %459 = vmatpush1.msra.mxu0 %v435
    %460 = vmatprep.subr.mxu0 0.0
    %461 = vmatpush1.msra.mxu0 %v436
    %462 = vmatprep.subr.mxu0 0.0
    %463 = vmatpush1.msra.mxu0 %v437
    %464 = vmatprep.subr.mxu0 0.0
    %465 = vmatpush1.msra.mxu0 %v438
    %466 = vmatprep.subr.mxu0 0.0
    %467 = vmatpush1.msra.mxu0 %v439
    %468 = vmatprep.subr.mxu0 0.0
    %469 = vmatpush1.msra.mxu0 %v440
    %470 = vmatprep.subr.mxu0 0.0
    %471 = vmatpush1.msra.mxu0 %v441
    %472 = vmatprep.subr.mxu0 0.0
    %473 = vmatpush1.msra.mxu0 %v442
    %474 = vmatprep.subr.mxu0 0.0
    %475 = vmatpush1.msra.mxu0 %v443
    %476 = vmatprep.subr.mxu0 0.0
    %477 = vmatpush1.msra.mxu0 %v444
    %478 = vmatprep.subr.mxu0 0.0
    %479 = vmatpush1.msra.mxu0 %v445
    %480 = vmatprep.subr.mxu0 0.0
    %481 = vmatpush1.msra.mxu0 %v446
    %482 = vmatprep.subr.mxu0 0.0
    %483 = vmatpush1.msra.mxu0 %v447
    %484 = vmatprep.subr.mxu0 0.0
    %485 = vmatpush1.msra.mxu0 %v448
    %486 = vmatprep.subr.mxu0 0.0
    %487 = vmatpush1.msra.mxu0 %v449
    %488 = vmatprep.subr.mxu0 0.0
    %489 = vmatpush1.msra.mxu0 %v450
    %490 = vmatprep.subr.mxu0 0.0
    %491 = vmatpush1.msra.mxu0 0.0
    %492 = vmatprep.subr.mxu0 0.0
    %493 = vmatpush1.msra.mxu0 0.0
    %494 = vmatprep.subr.mxu0 0.0
    %495 = vmatpush1.msra.mxu0 0.0
    %496 = vmatprep.subr.mxu0 0.0
    %497 = vmatpush1.msra.mxu0 0.0
    %498 = vmatprep.subr.mxu0 0.0
    %499 = vmatpush1.msra.mxu0 0.0
    %500 = vmatprep.subr.mxu0 0.0
    %501 = vmatpush1.msra.mxu0 0.0
    %502 = vmatprep.subr.mxu0 0.0
    %503 = vmatpush1.msra.mxu0 0.0
    %504 = vmatprep.subr.mxu0 0.0
    %505 = vmatpush1.msra.mxu0 0.0
    %506 = vmatprep.subr.mxu0 0.0
    %507 = vmatpush1.msra.mxu0 0.0
    %508 = vmatprep.subr.mxu0 0.0
    %509 = vmatpush1.msra.mxu0 0.0
    %510 = vmatprep.subr.mxu0 0.0
    %511 = vmatpush1.msra.mxu0 0.0
    %512 = vmatprep.subr.mxu0 0.0
    %513 = vmatpush1.msra.mxu0 0.0
    %514 = vmatprep.subr.mxu0 0.0
    %515 = vmatpush1.msra.mxu0 0.0
    %516 = vmatprep.subr.mxu0 0.0
    %517 = vmatpush1.msra.mxu0 0.0
    %518 = vmatprep.subr.mxu0 0.0
    %519 = vmatpush1.msra.mxu0 0.0
    %520 = vmatprep.subr.mxu0 0.0
    %521 = vmatpush1.msra.mxu0 0.0
    %522 = vmatprep.mubr.f32.mxu0 0.0
    %523 = vmatmul.mubr.f32.gmra.mrb[0].mxu0 %v397
    %v524 = vpop.f32.mrb[0].mxu0
    %v525 = vadd.f32 %v456, %v524
    %v526 = vpop.f32.mrb[0].mxu0
    %527 = vmatprep.mubr.f32.mxu0 0.0
    %528 = vmatmul.mubr.f32.gmra.mrb[0].mxu0 %v398
    %v529 = vpop.f32.mrb[0].mxu0
    %v530 = vadd.f32 %v456, %v529
    %v531 = vpop.f32.mrb[0].mxu0
    %532 = vmatprep.mubr.f32.mxu0 0.0
    %533 = vmatmul.mubr.f32.gmra.mrb[0].mxu0 %v399
    %v534 = vpop.f32.mrb[0].mxu0
    %v535 = vadd.f32 %v456, %v534
    %v536 = vpop.f32.mrb[0].mxu0
    %537 = vmatprep.mubr.f32.mxu0 0.0
    %538 = vmatmul.mubr.f32.gmra.mrb[0].mxu0 %v400
    %v539 = vpop.f32.mrb[0].mxu0
    %v540 = vadd.f32 %v456, %v539
    %v541 = vpop.f32.mrb[0].mxu0
    %542 = vmatprep.mubr.f32.mxu0 0.0
    %543 = vmatmul.mubr.f32.gmra.mrb[0].mxu0 %v401
    %v544 = vpop.f32.mrb[0].mxu0
    %v545 = vadd.f32 %v456, %v544
    %v546 = vpop.f32.mrb[0].mxu0
    %547 = vmatprep.mubr.f32.mxu0 0.0
    %548 = vmatmul.mubr.f32.gmra.mrb[0].mxu0 %v402
    %v549 = vpop.f32.mrb[0].mxu0
    %v550 = vadd.f32 %v456, %v549
    %v551 = vpop.f32.mrb[0].mxu0
    %552 = vmatprep.mubr.f32.mxu0 0.0
    %553 = vmatmul.mubr.f32.gmra.mrb[0].mxu0 %v403
    %v554 = vpop.f32.mrb[0].mxu0
    %v555 = vadd.f32 %v456, %v554
    %v556 = vpop.f32.mrb[0].mxu0
    %557 = vmatprep.mubr.f32.mxu0 0.0
    %558 = vmatmul.mubr.f32.gmra.mrb[0].mxu0 %v404
    %v559 = vpop.f32.mrb[0].mxu0
    %v560 = vadd.f32 %v456, %v559
    %v561 = vpop.f32.mrb[0].mxu0
    %562 = vmatprep.mubr.f32.mxu0 0.0
    %563 = vmatmul.mubr.f32.gmra.mrb[0].mxu0 %v405
    %v564 = vpop.f32.mrb[0].mxu0
    %v565 = vadd.f32 %v456, %v564
    %v566 = vpop.f32.mrb[0].mxu0
    %567 = vmatprep.mubr.f32.mxu0 0.0
    %568 = vmatmul.mubr.f32.gmra.mrb[0].mxu0 %v406
    %v569 = vpop.f32.mrb[0].mxu0
    %v570 = vadd.f32 %v456, %v569
    %v571 = vpop.f32.mrb[0].mxu0
    %572 = vmatprep.mubr.f32.mxu0 0.0
    %573 = vmatmul.mubr.f32.gmra.mrb[0].mxu0 %v407
    %v574 = vpop.f32.mrb[0].mxu0
    %v575 = vadd.f32 %v456, %v574
    %v576 = vpop.f32.mrb[0].mxu0
    %577 = vmatprep.mubr.f32.mxu0 0.0
    %578 = vmatmul.mubr.f32.gmra.mrb[0].mxu0 %v408
    %v579 = vpop.f32.mrb[0].mxu0
    %v580 = vadd.f32 %v456, %v579
    %v581 = vpop.f32.mrb[0].mxu0
    %582 = vmatprep.mubr.f32.mxu0 0.0
    %583 = vmatmul.mubr.f32.gmra.mrb[0].mxu0 %v409
    %v584 = vpop.f32.mrb[0].mxu0
    %v585 = vadd.f32 %v456, %v584
    %v586 = vpop.f32.mrb[0].mxu0
    %587 = vmatprep.mubr.f32.mxu0 0.0
    %588 = vmatmul.mubr.f32.gmra.mrb[0].mxu0 %v410
    %v589 = vpop.f32.mrb[0].mxu0
    %v590 = vadd.f32 %v456, %v589
    %v591 = vpop.f32.mrb[0].mxu0
    %592 = vmatprep.mubr.f32.mxu0 0.0
    %593 = vmatmul.mubr.f32.gmra.mrb[0].mxu0 %v411
    %v594 = vpop.f32.mrb[0].mxu0
    %v595 = vadd.f32 %v456, %v594
    %v596 = vpop.f32.mrb[0].mxu0
    %597 = vmatprep.mubr.f32.mxu0 0.0
    %598 = vmatmul.mubr.f32.gmra.mrb[0].mxu0 %v412
    %v599 = vpop.f32.mrb[0].mxu0
    %v600 = vadd.f32 %v456, %v599
    %v601 = vpop.f32.mrb[0].mxu0
    %602 = vmatprep.mubr.f32.mxu0 0.0
    %603 = vmatmul.mubr.f32.gmra.mrb[0].mxu0 %v413
    %v604 = vpop.f32.mrb[0].mxu0
    %v605 = vadd.f32 %v456, %v604
    %v606 = vpop.f32.mrb[0].mxu0
    %607 = vmatprep.mubr.f32.mxu0 0.0
    %608 = vmatmul.mubr.f32.gmra.mrb[0].mxu0 %v414
    %v609 = vpop.f32.mrb[0].mxu0
    %v610 = vadd.f32 %v456, %v609
    %v611 = vpop.f32.mrb[0].mxu0
    %612 = vmatprep.mubr.f32.mxu0 0.0
    %613 = vmatmul.mubr.f32.gmra.mrb[0].mxu0 %v415
    %v614 = vpop.f32.mrb[0].mxu0
    %v615 = vadd.f32 %v456, %v614
    %v616 = vpop.f32.mrb[0].mxu0
    %617 = vmatprep.mubr.f32.mxu0 0.0
    %618 = vmatmul.mubr.f32.gmra.mrb[0].mxu0 %v416
    %v619 = vpop.f32.mrb[0].mxu0
    %v620 = vadd.f32 %v456, %v619
    %v621 = vpop.f32.mrb[0].mxu0
    %622 = vmatprep.mubr.f32.mxu0 0.0
    %623 = vmatmul.mubr.f32.gmra.mrb[0].mxu0 %v417
    %v624 = vpop.f32.mrb[0].mxu0
    %v625 = vadd.f32 %v456, %v624
    %v626 = vpop.f32.mrb[0].mxu0
    %627 = vmatprep.mubr.f32.mxu0 0.0
    %628 = vmatmul.mubr.f32.gmra.mrb[0].mxu0 %v418
    %v629 = vpop.f32.mrb[0].mxu0
    %v630 = vadd.f32 %v456, %v629
    %v631 = vpop.f32.mrb[0].mxu0
    %632 = vmatprep.mubr.f32.mxu0 0.0
    %633 = vmatmul.mubr.f32.gmra.mrb[0].mxu0 %v419
    %v634 = vpop.f32.mrb[0].mxu0
    %v635 = vadd.f32 %v456, %v634
    %v636 = vpop.f32.mrb[0].mxu0
    %637 = vmatprep.mubr.f32.mxu0 0.0
    %638 = vmatmul.mubr.f32.gmra.mrb[0].mxu0 %v420
    %v639 = vpop.f32.mrb[0].mxu0
    %v640 = vadd.f32 %v456, %v639
    %v641 = vpop.f32.mrb[0].mxu0
    %642 = vmatprep.mubr.f32.mxu0 0.0
    %643 = vmatmul.mubr.f32.gmra.mrb[0].mxu0 %v421
    %v644 = vpop.f32.mrb[0].mxu0
    %v645 = vadd.f32 %v456, %v644
    %v646 = vpop.f32.mrb[0].mxu0
    %647 = vmatprep.mubr.f32.mxu0 0.0
    %648 = vmatmul.mubr.f32.gmra.mrb[0].mxu0 %v422
    %v649 = vpop.f32.mrb[0].mxu0
    %v650 = vadd.f32 %v456, %v649
    %v651 = vpop.f32.mrb[0].mxu0
    %652 = vmatprep.mubr.f32.mxu0 0.0
    %653 = vmatmul.mubr.f32.gmra.mrb[0].mxu0 %v423
    %v654 = vpop.f32.mrb[0].mxu0
    %v655 = vadd.f32 %v456, %v654
    %v656 = vpop.f32.mrb[0].mxu0
    %657 = vmatprep.mubr.f32.mxu0 0.0
    %658 = vmatmul.mubr.f32.gmra.mrb[0].mxu0 %v424
    %v659 = vpop.f32.mrb[0].mxu0
    %v660 = vadd.f32 %v456, %v659
    %v661 = vpop.f32.mrb[0].mxu0
    %662 = vmatprep.mubr.f32.mxu0 0.0
    %663 = vmatmul.mubr.f32.gmra.mrb[0].mxu0 %v425
    %v664 = vpop.f32.mrb[0].mxu0
    %v665 = vadd.f32 %v456, %v664
    %v666 = vpop.f32.mrb[0].mxu0
    %667 = vmatprep.mubr.f32.mxu0 0.0
    %668 = vmatmul.mubr.f32.gmra.mrb[0].mxu0 %v426
    %v669 = vpop.f32.mrb[0].mxu0
    %v670 = vadd.f32 %v456, %v669
    %v671 = vpop.f32.mrb[0].mxu0
    %672 = vmatprep.mubr.f32.mxu0 0.0
    %673 = vmatmul.mubr.f32.gmra.mrb[0].mxu0 %v427
    %v674 = vpop.f32.mrb[0].mxu0
    %v675 = vadd.f32 %v456, %v674
    %v676 = vpop.f32.mrb[0].mxu0
    %677 = vmatprep.mubr.f32.mxu0 0.0
    %678 = vmatmul.mubr.f32.gmra.mrb[0].mxu0 %v428
    %v679 = vpop.f32.mrb[0].mxu0
    %v680 = vadd.f32 %v456, %v679
    %v681 = vpop.f32.mrb[0].mxu0
    %682 = vmatprep.mubr.f32.mxu0 0.0
    %683 = vmatmul.mubr.f32.gmra.mrb[0].mxu0 %v429
    %v684 = vpop.f32.mrb[0].mxu0
    %v685 = vadd.f32 %v456, %v684
    %v686 = vpop.f32.mrb[0].mxu0
    %687 = vmatprep.mubr.f32.mxu0 0.0
    %688 = vmatmul.mubr.f32.gmra.mrb[0].mxu0 %v430
    %v689 = vpop.f32.mrb[0].mxu0
    %v690 = vadd.f32 %v456, %v689
    %v691 = vpop.f32.mrb[0].mxu0
    %692 = vmatprep.mubr.f32.mxu0 0.0
    %693 = vmatmul.mubr.f32.gmra.mrb[0].mxu0 %v431
    %v694 = vpop.f32.mrb[0].mxu0
    %v695 = vadd.f32 %v456, %v694
    %v696 = vpop.f32.mrb[0].mxu0
    %697 = vmatprep.mubr.f32.mxu0 0.0
    %698 = vmatmul.mubr.f32.gmra.mrb[0].mxu0 %v432
    %v699 = vpop.f32.mrb[0].mxu0
    %v700 = vadd.f32 %v456, %v699
    %v701 = vpop.f32.mrb[0].mxu0
    %702 = vmatprep.mubr.f32.mxu0 0.0
    %703 = vmatmul.mubr.f32.gmra.mrb[0].mxu0 %v433
    %v704 = vpop.f32.mrb[0].mxu0
    %v705 = vadd.f32 %v456, %v704
    %v706 = vpop.f32.mrb[0].mxu0
    %707 = vmatprep.mubr.f32.mxu0 0.0
    %708 = vmatmul.mubr.f32.gmra.mrb[0].mxu0 %v434
    %v709 = vpop.f32.mrb[0].mxu0
    %v710 = vadd.f32 %v456, %v709
    %v711 = vpop.f32.mrb[0].mxu0
    %712 = vdwg.mxu0
    %v713 = vtanh.pop %v525
    %v714 = vtanh.pop %v530
    %v715 = vtanh.pop %v535
    %v716 = vtanh.pop %v540
    %v717 = vtanh.pop %v545
    %v718 = vtanh.pop %v550
    %v719 = vtanh.pop %v555
    %v720 = vtanh.pop %v560
    %v721 = vtanh.pop %v565
    %v722 = vtanh.pop %v570
    %v723 = vtanh.pop %v575
    %v724 = vtanh.pop %v580
    %v725 = vtanh.pop %v585
    %v726 = vtanh.pop %v590
    %v727 = vtanh.pop %v595
    %v728 = vtanh.pop %v600
    %v729 = vtanh.pop %v605
    %v730 = vtanh.pop %v610
    %v731 = vtanh.pop %v615
    %v732 = vtanh.pop %v620
    %v733 = vtanh.pop %v625
    %v734 = vtanh.pop %v630
    %v735 = vtanh.pop %v635
    %v736 = vtanh.pop %v640
    %v737 = vtanh.pop %v645
    %v738 = vtanh.pop %v650
    %v739 = vtanh.pop %v655
    %v740 = vtanh.pop %v660
    %v741 = vtanh.pop %v665
    %v742 = vtanh.pop %v670
    %v743 = vtanh.pop %v675
    %v744 = vtanh.pop %v680
    %v745 = vtanh.pop %v685
    %v746 = vtanh.pop %v690
    %v747 = vtanh.pop %v695
    %v748 = vtanh.pop %v700
    %v749 = vtanh.pop %v705
    %v750 = vtanh.pop %v710
    %v751 = vld [vmem:[#allocation7] sm:$0xff]
    %v752 = vld [vmem:[#allocation7 + $0x8] sm:$0xff]
    %v753 = vld [vmem:[#allocation7 + $0x10] sm:$0xff]
    %v754 = vld [vmem:[#allocation7 + $0x18] sm:$0xff]
    %v755 = vld [vmem:[#allocation7 + $0x20] sm:$0xff]
    %v756 = vld [vmem:[#allocation7 + $0x28] sm:$0xff]
    %v757 = vld [vmem:[#allocation7 + $0x30] sm:$0xff]
    %v758 = vld [vmem:[#allocation7 + $0x38] sm:$0xff]
    %v759 = vld [vmem:[#allocation7 + $0x40] sm:$0xff]
    %v760 = vld [vmem:[#allocation7 + $0x48] sm:$0xff]
    %v761 = vld [vmem:[#allocation7 + $0x50] sm:$0xff]
    %v762 = vld [vmem:[#allocation7 + $0x58] sm:$0xff]
    %v763 = vld [vmem:[#allocation7 + $0x60] sm:$0xff]
    %v764 = vld [vmem:[#allocation7 + $0x68] sm:$0xff]
    %v765 = vld [vmem:[#allocation7 + $0x70] sm:$0xff]
    %v766 = vld [vmem:[#allocation7 + $0x78] sm:$0xff]
    %v767 = vld [vmem:[%s6] sm:$0x1]
    %v769 = vlaneseq
    %v770 = vshrl.u32 %v769, 7
    %v771 = vsub.s32 0, %v770
    %v772 = vrot.slane %v767, %v771
    %774 = vmatprep.subr.mxu0 0.0
    %775 = vmatpush1.msra.mxu0 %v751
    %776 = vmatprep.subr.mxu0 0.0
    %777 = vmatpush1.msra.mxu0 %v752
    %778 = vmatprep.subr.mxu0 0.0
    %779 = vmatpush1.msra.mxu0 %v753
    %780 = vmatprep.subr.mxu0 0.0
    %781 = vmatpush1.msra.mxu0 %v754
    %782 = vmatprep.subr.mxu0 0.0
    %783 = vmatpush1.msra.mxu0 %v755
    %784 = vmatprep.subr.mxu0 0.0
    %785 = vmatpush1.msra.mxu0 %v756
    %786 = vmatprep.subr.mxu0 0.0
    %787 = vmatpush1.msra.mxu0 %v757
    %788 = vmatprep.subr.mxu0 0.0
    %789 = vmatpush1.msra.mxu0 %v758
    %790 = vmatprep.subr.mxu0 0.0
    %791 = vmatpush1.msra.mxu0 %v759
    %792 = vmatprep.subr.mxu0 0.0
    %793 = vmatpush1.msra.mxu0 %v760
    %794 = vmatprep.subr.mxu0 0.0
    %795 = vmatpush1.msra.mxu0 %v761
    %796 = vmatprep.subr.mxu0 0.0
    %797 = vmatpush1.msra.mxu0 %v762
    %798 = vmatprep.subr.mxu0 0.0
    %799 = vmatpush1.msra.mxu0 %v763
    %800 = vmatprep.subr.mxu0 0.0
    %801 = vmatpush1.msra.mxu0 %v764
    %802 = vmatprep.subr.mxu0 0.0
    %803 = vmatpush1.msra.mxu0 %v765
    %804 = vmatprep.subr.mxu0 0.0
    %805 = vmatpush1.msra.mxu0 %v766
    %806 = vmatprep.subr.mxu0 0.0
    %807 = vmatpush1.msra.mxu0 0.0
    %808 = vmatprep.subr.mxu0 0.0
    %809 = vmatpush1.msra.mxu0 0.0
    %810 = vmatprep.subr.mxu0 0.0
    %811 = vmatpush1.msra.mxu0 0.0
    %812 = vmatprep.subr.mxu0 0.0
    %813 = vmatpush1.msra.mxu0 0.0
    %814 = vmatprep.subr.mxu0 0.0
    %815 = vmatpush1.msra.mxu0 0.0
    %816 = vmatprep.subr.mxu0 0.0
    %817 = vmatpush1.msra.mxu0 0.0
    %818 = vmatprep.subr.mxu0 0.0
    %819 = vmatpush1.msra.mxu0 0.0
    %820 = vmatprep.subr.mxu0 0.0
    %821 = vmatpush1.msra.mxu0 0.0
    %822 = vmatprep.subr.mxu0 0.0
    %823 = vmatpush1.msra.mxu0 0.0
    %824 = vmatprep.subr.mxu0 0.0
    %825 = vmatpush1.msra.mxu0 0.0
    %826 = vmatprep.subr.mxu0 0.0
    %827 = vmatpush1.msra.mxu0 0.0
    %828 = vmatprep.subr.mxu0 0.0
    %829 = vmatpush1.msra.mxu0 0.0
    %830 = vmatprep.subr.mxu0 0.0
    %831 = vmatpush1.msra.mxu0 0.0
    %832 = vmatprep.subr.mxu0 0.0
    %833 = vmatpush1.msra.mxu0 0.0
    %834 = vmatprep.subr.mxu0 0.0
    %835 = vmatpush1.msra.mxu0 0.0
    %836 = vmatprep.subr.mxu0 0.0
    %837 = vmatpush1.msra.mxu0 0.0
    %838 = vmatprep.mubr.f32.mxu0 0.0
    %839 = vmatmul.mubr.f32.gmra.mrb[0].mxu0 %v713
    %v840 = vpop.f32.mrb[0].mxu0
    %v841 = vadd.f32 %v772, %v840
    %v842 = vpop.f32.mrb[0].mxu0
    %843 = vmatprep.mubr.f32.mxu0 0.0
    %844 = vmatmul.mubr.f32.gmra.mrb[0].mxu0 %v714
    %v845 = vpop.f32.mrb[0].mxu0
    %v846 = vadd.f32 %v772, %v845
    %v847 = vpop.f32.mrb[0].mxu0
    %848 = vmatprep.mubr.f32.mxu0 0.0
    %849 = vmatmul.mubr.f32.gmra.mrb[0].mxu0 %v715
    %v850 = vpop.f32.mrb[0].mxu0
    %v851 = vadd.f32 %v772, %v850
    %v852 = vpop.f32.mrb[0].mxu0
    %853 = vmatprep.mubr.f32.mxu0 0.0
    %854 = vmatmul.mubr.f32.gmra.mrb[0].mxu0 %v716
    %v855 = vpop.f32.mrb[0].mxu0
    %v856 = vadd.f32 %v772, %v855
    %v857 = vpop.f32.mrb[0].mxu0
    %858 = vmatprep.mubr.f32.mxu0 0.0
    %859 = vmatmul.mubr.f32.gmra.mrb[0].mxu0 %v717
    %v860 = vpop.f32.mrb[0].mxu0
    %v861 = vadd.f32 %v772, %v860
    %v862 = vpop.f32.mrb[0].mxu0
    %863 = vmatprep.mubr.f32.mxu0 0.0
    %864 = vmatmul.mubr.f32.gmra.mrb[0].mxu0 %v718
    %v865 = vpop.f32.mrb[0].mxu0
    %v866 = vadd.f32 %v772, %v865
    %v867 = vpop.f32.mrb[0].mxu0
    %868 = vmatprep.mubr.f32.mxu0 0.0
    %869 = vmatmul.mubr.f32.gmra.mrb[0].mxu0 %v719
    %v870 = vpop.f32.mrb[0].mxu0
    %v871 = vadd.f32 %v772, %v870
    %v872 = vpop.f32.mrb[0].mxu0
    %873 = vmatprep.mubr.f32.mxu0 0.0
    %874 = vmatmul.mubr.f32.gmra.mrb[0].mxu0 %v720
    %v875 = vpop.f32.mrb[0].mxu0
    %v876 = vadd.f32 %v772, %v875
    %v877 = vpop.f32.mrb[0].mxu0
    %878 = vmatprep.mubr.f32.mxu0 0.0
    %879 = vmatmul.mubr.f32.gmra.mrb[0].mxu0 %v721
    %v880 = vpop.f32.mrb[0].mxu0
    %v881 = vadd.f32 %v772, %v880
    %v882 = vpop.f32.mrb[0].mxu0
    %883 = vmatprep.mubr.f32.mxu0 0.0
    %884 = vmatmul.mubr.f32.gmra.mrb[0].mxu0 %v722
    %v885 = vpop.f32.mrb[0].mxu0
    %v886 = vadd.f32 %v772, %v885
    %v887 = vpop.f32.mrb[0].mxu0
    %888 = vmatprep.mubr.f32.mxu0 0.0
    %889 = vmatmul.mubr.f32.gmra.mrb[0].mxu0 %v723
    %v890 = vpop.f32.mrb[0].mxu0
    %v891 = vadd.f32 %v772, %v890
    %v892 = vpop.f32.mrb[0].mxu0
    %893 = vmatprep.mubr.f32.mxu0 0.0
    %894 = vmatmul.mubr.f32.gmra.mrb[0].mxu0 %v724
    %v895 = vpop.f32.mrb[0].mxu0
    %v896 = vadd.f32 %v772, %v895
    %v897 = vpop.f32.mrb[0].mxu0
    %898 = vmatprep.mubr.f32.mxu0 0.0
    %899 = vmatmul.mubr.f32.gmra.mrb[0].mxu0 %v725
    %v900 = vpop.f32.mrb[0].mxu0
    %v901 = vadd.f32 %v772, %v900
    %v902 = vpop.f32.mrb[0].mxu0
    %903 = vmatprep.mubr.f32.mxu0 0.0
    %904 = vmatmul.mubr.f32.gmra.mrb[0].mxu0 %v726
    %v905 = vpop.f32.mrb[0].mxu0
    %v906 = vadd.f32 %v772, %v905
    %v907 = vpop.f32.mrb[0].mxu0
    %908 = vmatprep.mubr.f32.mxu0 0.0
    %909 = vmatmul.mubr.f32.gmra.mrb[0].mxu0 %v727
    %v910 = vpop.f32.mrb[0].mxu0
    %v911 = vadd.f32 %v772, %v910
    %v912 = vpop.f32.mrb[0].mxu0
    %913 = vmatprep.mubr.f32.mxu0 0.0
    %914 = vmatmul.mubr.f32.gmra.mrb[0].mxu0 %v728
    %v915 = vpop.f32.mrb[0].mxu0
    %v916 = vadd.f32 %v772, %v915
    %v917 = vpop.f32.mrb[0].mxu0
    %918 = vmatprep.mubr.f32.mxu0 0.0
    %919 = vmatmul.mubr.f32.gmra.mrb[0].mxu0 %v729
    %v920 = vpop.f32.mrb[0].mxu0
    %v921 = vadd.f32 %v772, %v920
    %v922 = vpop.f32.mrb[0].mxu0
    %923 = vmatprep.mubr.f32.mxu0 0.0
    %924 = vmatmul.mubr.f32.gmra.mrb[0].mxu0 %v730
    %v925 = vpop.f32.mrb[0].mxu0
    %v926 = vadd.f32 %v772, %v925
    %v927 = vpop.f32.mrb[0].mxu0
    %928 = vmatprep.mubr.f32.mxu0 0.0
    %929 = vmatmul.mubr.f32.gmra.mrb[0].mxu0 %v731
    %v930 = vpop.f32.mrb[0].mxu0
    %v931 = vadd.f32 %v772, %v930
    %v932 = vpop.f32.mrb[0].mxu0
    %933 = vmatprep.mubr.f32.mxu0 0.0
    %934 = vmatmul.mubr.f32.gmra.mrb[0].mxu0 %v732
    %v935 = vpop.f32.mrb[0].mxu0
    %v936 = vadd.f32 %v772, %v935
    %v937 = vpop.f32.mrb[0].mxu0
    %938 = vmatprep.mubr.f32.mxu0 0.0
    %939 = vmatmul.mubr.f32.gmra.mrb[0].mxu0 %v733
    %v940 = vpop.f32.mrb[0].mxu0
    %v941 = vadd.f32 %v772, %v940
    %v942 = vpop.f32.mrb[0].mxu0
    %943 = vmatprep.mubr.f32.mxu0 0.0
    %944 = vmatmul.mubr.f32.gmra.mrb[0].mxu0 %v734
    %v945 = vpop.f32.mrb[0].mxu0
    %v946 = vadd.f32 %v772, %v945
    %v947 = vpop.f32.mrb[0].mxu0
    %948 = vmatprep.mubr.f32.mxu0 0.0
    %949 = vmatmul.mubr.f32.gmra.mrb[0].mxu0 %v735
    %v950 = vpop.f32.mrb[0].mxu0
    %v951 = vadd.f32 %v772, %v950
    %v952 = vpop.f32.mrb[0].mxu0
    %953 = vmatprep.mubr.f32.mxu0 0.0
    %954 = vmatmul.mubr.f32.gmra.mrb[0].mxu0 %v736
    %v955 = vpop.f32.mrb[0].mxu0
    %v956 = vadd.f32 %v772, %v955
    %v957 = vpop.f32.mrb[0].mxu0
    %958 = vmatprep.mubr.f32.mxu0 0.0
    %959 = vmatmul.mubr.f32.gmra.mrb[0].mxu0 %v737
    %v960 = vpop.f32.mrb[0].mxu0
    %v961 = vadd.f32 %v772, %v960
    %v962 = vpop.f32.mrb[0].mxu0
    %963 = vmatprep.mubr.f32.mxu0 0.0
    %964 = vmatmul.mubr.f32.gmra.mrb[0].mxu0 %v738
    %v965 = vpop.f32.mrb[0].mxu0
    %v966 = vadd.f32 %v772, %v965
    %v967 = vpop.f32.mrb[0].mxu0
    %968 = vmatprep.mubr.f32.mxu0 0.0
    %969 = vmatmul.mubr.f32.gmra.mrb[0].mxu0 %v739
    %v970 = vpop.f32.mrb[0].mxu0
    %v971 = vadd.f32 %v772, %v970
    %v972 = vpop.f32.mrb[0].mxu0
    %973 = vmatprep.mubr.f32.mxu0 0.0
    %974 = vmatmul.mubr.f32.gmra.mrb[0].mxu0 %v740
    %v975 = vpop.f32.mrb[0].mxu0
    %v976 = vadd.f32 %v772, %v975
    %v977 = vpop.f32.mrb[0].mxu0
    %978 = vmatprep.mubr.f32.mxu0 0.0
    %979 = vmatmul.mubr.f32.gmra.mrb[0].mxu0 %v741
    %v980 = vpop.f32.mrb[0].mxu0
    %v981 = vadd.f32 %v772, %v980
    %v982 = vpop.f32.mrb[0].mxu0
    %983 = vmatprep.mubr.f32.mxu0 0.0
    %984 = vmatmul.mubr.f32.gmra.mrb[0].mxu0 %v742
    %v985 = vpop.f32.mrb[0].mxu0
    %v986 = vadd.f32 %v772, %v985
    %v987 = vpop.f32.mrb[0].mxu0
    %988 = vmatprep.mubr.f32.mxu0 0.0
    %989 = vmatmul.mubr.f32.gmra.mrb[0].mxu0 %v743
    %v990 = vpop.f32.mrb[0].mxu0
    %v991 = vadd.f32 %v772, %v990
    %v992 = vpop.f32.mrb[0].mxu0
    %993 = vmatprep.mubr.f32.mxu0 0.0
    %994 = vmatmul.mubr.f32.gmra.mrb[0].mxu0 %v744
    %v995 = vpop.f32.mrb[0].mxu0
    %v996 = vadd.f32 %v772, %v995
    %v997 = vpop.f32.mrb[0].mxu0
    %998 = vmatprep.mubr.f32.mxu0 0.0
    %999 = vmatmul.mubr.f32.gmra.mrb[0].mxu0 %v745
    %v1000 = vpop.f32.mrb[0].mxu0
    %v1001 = vadd.f32 %v772, %v1000
    %v1002 = vpop.f32.mrb[0].mxu0
    %1003 = vmatprep.mubr.f32.mxu0 0.0
    %1004 = vmatmul.mubr.f32.gmra.mrb[0].mxu0 %v746
    %v1005 = vpop.f32.mrb[0].mxu0
    %v1006 = vadd.f32 %v772, %v1005
    %v1007 = vpop.f32.mrb[0].mxu0
    %1008 = vmatprep.mubr.f32.mxu0 0.0
    %1009 = vmatmul.mubr.f32.gmra.mrb[0].mxu0 %v747
    %v1010 = vpop.f32.mrb[0].mxu0
    %v1011 = vadd.f32 %v772, %v1010
    %v1012 = vpop.f32.mrb[0].mxu0
    %1013 = vmatprep.mubr.f32.mxu0 0.0
    %1014 = vmatmul.mubr.f32.gmra.mrb[0].mxu0 %v748
    %v1015 = vpop.f32.mrb[0].mxu0
    %v1016 = vadd.f32 %v772, %v1015
    %v1017 = vpop.f32.mrb[0].mxu0
    %1018 = vmatprep.mubr.f32.mxu0 0.0
    %1019 = vmatmul.mubr.f32.gmra.mrb[0].mxu0 %v749
    %v1020 = vpop.f32.mrb[0].mxu0
    %v1021 = vadd.f32 %v772, %v1020
    %v1022 = vpop.f32.mrb[0].mxu0
    %1023 = vmatprep.mubr.f32.mxu0 0.0
    %1024 = vmatmul.mubr.f32.gmra.mrb[0].mxu0 %v750
    %v1025 = vpop.f32.mrb[0].mxu0
    %v1026 = vadd.f32 %v772, %v1025
    %v1027 = vpop.f32.mrb[0].mxu0
    %1028 = vdwg.mxu0
    %vm1029 = vcmask 261120
    %1030 = vst.msk [vmem:[%s7] sm:$0xff] %vm1029, %v841
    %1031 = vst.msk [vmem:[%s7 + $0x8] sm:$0xff] %vm1029, %v846
    %1032 = vst.msk [vmem:[%s7 + $0x10] sm:$0xff] %vm1029, %v851
    %1033 = vst.msk [vmem:[%s7 + $0x18] sm:$0xff] %vm1029, %v856
    %1034 = vst.msk [vmem:[%s7 + $0x20] sm:$0xff] %vm1029, %v861
    %1035 = vst.msk [vmem:[%s7 + $0x28] sm:$0xff] %vm1029, %v866
    %1036 = vst.msk [vmem:[%s7 + $0x30] sm:$0xff] %vm1029, %v871
    %1037 = vst.msk [vmem:[%s7 + $0x38] sm:$0xff] %vm1029, %v876
    %1038 = vst.msk [vmem:[%s7 + $0x40] sm:$0xff] %vm1029, %v881
    %1039 = vst.msk [vmem:[%s7 + $0x48] sm:$0xff] %vm1029, %v886
    %1040 = vst.msk [vmem:[%s7 + $0x50] sm:$0xff] %vm1029, %v891
    %1041 = vst.msk [vmem:[%s7 + $0x58] sm:$0xff] %vm1029, %v896
    %1042 = vst.msk [vmem:[%s7 + $0x60] sm:$0xff] %vm1029, %v901
    %1043 = vst.msk [vmem:[%s7 + $0x68] sm:$0xff] %vm1029, %v906
    %1044 = vst.msk [vmem:[%s7 + $0x70] sm:$0xff] %vm1029, %v911
    %1045 = vst.msk [vmem:[%s7 + $0x78] sm:$0xff] %vm1029, %v916
    %1046 = vst.msk [vmem:[%s7 + $0x80] sm:$0xff] %vm1029, %v921
    %1047 = vst.msk [vmem:[%s7 + $0x88] sm:$0xff] %vm1029, %v926
    %1048 = vst.msk [vmem:[%s7 + $0x90] sm:$0xff] %vm1029, %v931
    %1049 = vst.msk [vmem:[%s7 + $0x98] sm:$0xff] %vm1029, %v936
    %1050 = vst.msk [vmem:[%s7 + $0xa0] sm:$0xff] %vm1029, %v941
    %1051 = vst.msk [vmem:[%s7 + $0xa8] sm:$0xff] %vm1029, %v946
    %1052 = vst.msk [vmem:[%s7 + $0xb0] sm:$0xff] %vm1029, %v951
    %1053 = vst.msk [vmem:[%s7 + $0xb8] sm:$0xff] %vm1029, %v956
    %1054 = vst.msk [vmem:[%s7 + $0xc0] sm:$0xff] %vm1029, %v961
    %1055 = vst.msk [vmem:[%s7 + $0xc8] sm:$0xff] %vm1029, %v966
    %1056 = vst.msk [vmem:[%s7 + $0xd0] sm:$0xff] %vm1029, %v971
    %1057 = vst.msk [vmem:[%s7 + $0xd8] sm:$0xff] %vm1029, %v976
    %1058 = vst.msk [vmem:[%s7 + $0xe0] sm:$0xff] %vm1029, %v981
    %1059 = vst.msk [vmem:[%s7 + $0xe8] sm:$0xff] %vm1029, %v986
    %1060 = vst.msk [vmem:[%s7 + $0xf0] sm:$0xff] %vm1029, %v991
    %1061 = vst.msk [vmem:[%s7 + $0xf8] sm:$0xff] %vm1029, %v996
    %1062 = vst.msk [vmem:[%s7 + $0x100] sm:$0xff] %vm1029, %v1001
    %1063 = vst.msk [vmem:[%s7 + $0x108] sm:$0xff] %vm1029, %v1006
    %1064 = vst.msk [vmem:[%s7 + $0x110] sm:$0xff] %vm1029, %v1011
    %1065 = vst.msk [vmem:[%s7 + $0x118] sm:$0xff] %vm1029, %v1016
    %1066 = vst.msk [vmem:[%s7 + $0x120] sm:$0xff] %vm1029, %v1021
    %1067 = vst.msk [vmem:[%s7 + $0x128] sm:$0xff] %vm1029, %v1026
    // Predicated region
    $region46: #{tpu_custom_call.1} parent=1 // pred_check
      _
    $region47: #{tpu_custom_call.1} parent=1 // pred_check_branch
      %1069 = sbr.rel (0) target = $region49
    $region48: #{tpu_custom_call.1} parent=1 // pred_region
      _
    $region49: #{tpu_custom_call.1} parent=1 // pred_fallthru
      _
    // Predicated region
    $region50: #{tpu_custom_call.1} parent=1 // pred_check
      _
    $region51: #{tpu_custom_call.1} parent=1 // pred_check_branch
      %1071 = sbr.rel (0) target = $region53
    $region52: #{tpu_custom_call.1} parent=1 // pred_region
      _
    $region53: #{tpu_custom_call.1} parent=1 // pred_fallthru
      _
    %1072 = vsyncpa [#allocation3], 1
    %1073 = vsyncpa [#allocation5], 1
    %1074 = vsyncpa [#allocation8], 1

</llo_original>
